<compile_context>
chip_gen: v6e
topology: v6e:2x2x1
jax: 0.10.0
libtpu: 0.0.40
codegen_flags: <defaults>
</compile_context>

<pallas_src>
import jax
import jax.numpy as jnp
from jax.experimental import pallas as pl
from jax.experimental.pallas import tpu as pltpu

SLICE_FEATS = 58      # forward uses x[:, :58]
INPUT_FEATS = 64      # raw feature dim of the demo input (>= SLICE_FEATS)
HIDDEN1 = 128
HIDDEN2 = 64
HIDDEN2_PAD = 128     # lane-dense padded hidden2 width
NUM_CLASSES = 10
OUT_PAD = 128         # lane-dense padded output width (multiple of 128)
MAX_TILE_B = 1024     # batch tile cap (weights ~100 KB; x/out tiles ~1.5 MB incl. double buf)
BATCH = 8


def _round_up(n, m):
    return ((n + m - 1) // m) * m


def _pick_tile_b(B):
    """Batch tile: single full-batch block for small B (block dim == array dim is always
    layout-legal), else tiles rounded to 256 with >= 2 tiles so v7x megacore gets work."""
    if B <= 512:
        return B
    half = _round_up(-(-B // 2), 256)
    return min(MAX_TILE_B, half)


def _mlp_kernel(x_ref, w1_ref, b1_ref, w2_ref, b2_ref, w3_ref, b3_ref, o_ref):
    # Cast the f32 x tile to bf16 in-kernel (no separate XLA pad/cast pass in the wrapper).
    x = x_ref[...].astype(jnp.bfloat16)
    # fc1: Linear(58,128) via zero-padded (F,128) bf16 weight; f32 accumulate; bias+ReLU on VPU.
    h1 = jnp.dot(x, w1_ref[...], preferred_element_type=jnp.float32)
    h1 = jnp.maximum(h1 + b1_ref[...], 0.0)
    # fc2: Linear(128,64) zero-padded to 128 lanes (+bias+ReLU) -> full-vreg intermediates.
    h2 = jnp.dot(h1.astype(jnp.bfloat16), w2_ref[...], preferred_element_type=jnp.float32)
    h2 = jnp.maximum(h2 + b2_ref[...], 0.0)
    # fc3: Linear(64,NUM_CLASSES) zero-padded to OUT_PAD lanes -> unmasked lane-dense stores.
    out = jnp.dot(h2.astype(jnp.bfloat16), w3_ref[...], preferred_element_type=jnp.float32)
    o_ref[...] = (out + b3_ref[...]).astype(o_ref.dtype)


def prepare_params(params, in_feats):
    """One-time prep: pad w1 along the input dim (removes the in-kernel x[:, :58] slice),
    pad fc2/fc3 to 128 lanes (lane-dense intermediates / stores), cast matmul operands to
    bf16 (biases stay f32)."""
    w1, b1, w2, b2, w3, b3 = params
    assert in_feats >= SLICE_FEATS
    w1_pad = jnp.zeros((in_feats, HIDDEN1), jnp.float32).at[:SLICE_FEATS].set(w1)
    w2_pad = jnp.zeros((HIDDEN1, HIDDEN2_PAD), jnp.float32).at[:, :HIDDEN2].set(w2)
    b2_pad = jnp.zeros((1, HIDDEN2_PAD), jnp.float32).at[:, :HIDDEN2].set(b2)
    w3_pad = jnp.zeros((HIDDEN2_PAD, OUT_PAD), jnp.float32).at[:HIDDEN2, :NUM_CLASSES].set(w3)
    b3_pad = jnp.zeros((1, OUT_PAD), jnp.float32).at[:, :NUM_CLASSES].set(b3)
    return (w1_pad.astype(jnp.bfloat16), b1.astype(jnp.float32),
            w2_pad.astype(jnp.bfloat16), b2_pad,
            w3_pad.astype(jnp.bfloat16), b3_pad)


@jax.jit
def speech_classifier_forward(x, prepared):
    """x: (B, F) float32 with F >= 58.  Returns logits (B, NUM_CLASSES) float32."""
    w1, b1, w2, b2, w3, b3 = prepared
    B, F = x.shape

    tile_b = _pick_tile_b(B)
    n_tiles = pl.cdiv(B, tile_b)
    b_pad = n_tiles * tile_b  # output padded to whole tiles; ragged rows sliced off below

    flops = 2 * b_pad * (F * HIDDEN1 + HIDDEN1 * HIDDEN2_PAD + HIDDEN2_PAD * OUT_PAD)
    bytes_accessed = (B * F * 4                                   # x read (f32, no copy pass)
                      + w1.size * 2 + w2.size * 2 + w3.size * 2   # bf16 weights
                      + b1.size * 4 + b2.size * 4 + b3.size * 4   # f32 biases
                      + b_pad * OUT_PAD * 2)                      # bf16 output write

    out = pl.pallas_call(
        _mlp_kernel,
        out_shape=jax.ShapeDtypeStruct((b_pad, OUT_PAD), jnp.bfloat16),
        grid=(n_tiles,),
        in_specs=[
            pl.BlockSpec((tile_b, F), lambda i: (i, 0)),            # x tile (pipelined; last
                                                                    #  tile may be ragged —
                                                                    #  OOB rows are discarded)
            pl.BlockSpec((F, HIDDEN1), lambda i: (0, 0)),           # weights stay VMEM-resident
            pl.BlockSpec((1, HIDDEN1), lambda i: (0, 0)),
            pl.BlockSpec((HIDDEN1, HIDDEN2_PAD), lambda i: (0, 0)),
            pl.BlockSpec((1, HIDDEN2_PAD), lambda i: (0, 0)),
            pl.BlockSpec((HIDDEN2_PAD, OUT_PAD), lambda i: (0, 0)),
            pl.BlockSpec((1, OUT_PAD), lambda i: (0, 0)),
        ],
        out_specs=pl.BlockSpec((tile_b, OUT_PAD), lambda i: (i, 0)),
        compiler_params=pltpu.CompilerParams(
            dimension_semantics=("parallel",)),                     # shards batch over v7x 2 TCs
        cost_estimate=pl.CostEstimate(flops=flops, transcendentals=0,
                                      bytes_accessed=bytes_accessed),
    )(x, w1, b1, w2, b2, w3, b3)

    return out[:B, :NUM_CLASSES].astype(jnp.float32)


def init_params(key):
    """Deterministic init mirroring the PyTorch layer shapes.
    Weights stored as (in_features, out_features); biases as (1, out_features)."""
    k1, k2, k3, k4, k5, k6 = jax.random.split(key, 6)

    def unif(k, shape, fan_in):
        bound = 1.0 / jnp.sqrt(fan_in)
        return jax.random.uniform(k, shape, jnp.float32, -bound, bound)

    w1 = unif(k1, (SLICE_FEATS, HIDDEN1), SLICE_FEATS)
    b1 = unif(k2, (1, HIDDEN1), SLICE_FEATS)
    w2 = unif(k3, (HIDDEN1, HIDDEN2), HIDDEN1)
    b2 = unif(k4, (1, HIDDEN2), HIDDEN1)
    w3 = unif(k5, (HIDDEN2, NUM_CLASSES), HIDDEN2)
    b3 = unif(k6, (1, NUM_CLASSES), HIDDEN2)
    return (w1, b1, w2, b2, w3, b3)


def reference_forward_f32(x, params):
    """Pure-JAX f32 reference (faithful to the PyTorch module in eval mode)."""
    w1, b1, w2, b2, w3, b3 = params
    h = x[:, :SLICE_FEATS]
    h = jnp.maximum(h @ w1 + b1, 0.0)
    h = jnp.maximum(h @ w2 + b2, 0.0)
    return h @ w3 + b3


def reference_forward_bf16(x, params):
    """Pure-JAX reference mirroring the kernel's bf16-input / f32-accumulate precision."""
    w1, b1, w2, b2, w3, b3 = params
    bf = jnp.bfloat16
    h = x[:, :SLICE_FEATS].astype(bf)
    h = jnp.maximum(jnp.dot(h, w1.astype(bf), preferred_element_type=jnp.float32) + b1, 0.0)
    h = jnp.maximum(jnp.dot(h.astype(bf), w2.astype(bf), preferred_element_type=jnp.float32) + b2, 0.0)
    return jnp.dot(h.astype(bf), w3.astype(bf), preferred_element_type=jnp.float32) + b3


if __name__ == "__main__":
    key = jax.random.PRNGKey(0)
    kx, kp = jax.random.split(key)

    x = jax.random.normal(kx, (BATCH, INPUT_FEATS), jnp.float32)
    params = init_params(kp)
    prepared = prepare_params(params, INPUT_FEATS)

    out = speech_classifier_forward(x, prepared)
    out = jax.block_until_ready(out)
    assert out.shape == (BATCH, NUM_CLASSES)
    assert jnp.all(jnp.isfinite(out))

    # Exactness vs. a reference using the same bf16-in / f32-accumulate precision
    # (kernel output is bf16, so allow one bf16 ulp of slack).
    ref_bf16 = reference_forward_bf16(x, params)
    assert jnp.allclose(out, ref_bf16, atol=1e-2, rtol=1e-2), "mismatch vs bf16 reference"

    # Faithfulness to the original f32 module (looser tolerance due to bf16 matmul/output).
    ref_f32 = reference_forward_f32(x, params)
    assert jnp.allclose(out, ref_f32, atol=5e-2, rtol=5e-2), "mismatch vs f32 reference"

    print("KERNEL_OK")
</pallas_src>

<mosaic_0001>
module attributes {stable_mosaic.version = 11 : i64} {
  func.func @_mlp_kernel(%arg0: i32, %arg1: memref<8x64xf32, #tpu.memory_space<vmem>>, %arg2: memref<64x128xbf16, #tpu.memory_space<vmem>>, %arg3: memref<1x128xf32, #tpu.memory_space<vmem>>, %arg4: memref<128x128xbf16, #tpu.memory_space<vmem>>, %arg5: memref<1x128xf32, #tpu.memory_space<vmem>>, %arg6: memref<128x128xbf16, #tpu.memory_space<vmem>>, %arg7: memref<1x128xf32, #tpu.memory_space<vmem>>, %arg8: memref<8x128xbf16, #tpu.memory_space<vmem>>) attributes {dimension_semantics = [#tpu.dimension_semantics<parallel>], iteration_bounds = array<i64: 1>, scalar_prefetch = 0 : i64, scratch_operands = 0 : i64, tpu.core_type = #tpu.core_type<tc>, window_params = [{transform_indices = @transform_0, window_bounds = array<i64: 8, 64>}, {pipeline_mode = #tpu.pipeline_mode<synchronous>, transform_indices = @transform_1, window_bounds = array<i64: 64, 128>}, {pipeline_mode = #tpu.pipeline_mode<synchronous>, transform_indices = @transform_2, window_bounds = array<i64: 1, 128>}, {pipeline_mode = #tpu.pipeline_mode<synchronous>, transform_indices = @transform_3, window_bounds = array<i64: 128, 128>}, {pipeline_mode = #tpu.pipeline_mode<synchronous>, transform_indices = @transform_4, window_bounds = array<i64: 1, 128>}, {pipeline_mode = #tpu.pipeline_mode<synchronous>, transform_indices = @transform_5, window_bounds = array<i64: 128, 128>}, {pipeline_mode = #tpu.pipeline_mode<synchronous>, transform_indices = @transform_6, window_bounds = array<i64: 1, 128>}, {transform_indices = @transform_7, window_bounds = array<i64: 8, 128>}]} {
    %c0 = arith.constant 0 : index
    %c0_0 = arith.constant 0 : index
    %0 = vector.load %arg1[%c0, %c0_0] : memref<8x64xf32, #tpu.memory_space<vmem>>, vector<8x64xf32>
    %1 = arith.truncf %0 : vector<8x64xf32> to vector<8x64xbf16>
    %c0_1 = arith.constant 0 : index
    %c0_2 = arith.constant 0 : index
    %2 = vector.load %arg2[%c0_1, %c0_2] : memref<64x128xbf16, #tpu.memory_space<vmem>>, vector<64x128xbf16>
    %cst = arith.constant dense<0.000000e+00> : vector<8x128xf32>
    %3 = tpu.matmul %1, %2, %cst {dimension_numbers = #tpu.dot_dimension_numbers<[1], [0], [0], [1], [0, 0, 1, 1], [], []>} : vector<8x64xbf16>, vector<64x128xbf16>, vector<8x128xf32> -> vector<8x128xf32>
    %c0_3 = arith.constant 0 : index
    %c0_4 = arith.constant 0 : index
    %4 = vector.load %arg3[%c0_3, %c0_4] : memref<1x128xf32, #tpu.memory_space<vmem>>, vector<1x128xf32>
    %5 = vector.broadcast %4 : vector<1x128xf32> to vector<8x128xf32>
    %6 = arith.addf %3, %5 : vector<8x128xf32>
    %cst_5 = arith.constant 0.000000e+00 : f32
    %7 = vector.broadcast %cst_5 : f32 to vector<8x128xf32>
    %8 = arith.maximumf %6, %7 : vector<8x128xf32>
    %9 = arith.truncf %8 : vector<8x128xf32> to vector<8x128xbf16>
    %c0_6 = arith.constant 0 : index
    %c0_7 = arith.constant 0 : index
    %10 = vector.load %arg4[%c0_6, %c0_7] : memref<128x128xbf16, #tpu.memory_space<vmem>>, vector<128x128xbf16>
    %cst_8 = arith.constant dense<0.000000e+00> : vector<8x128xf32>
    %11 = tpu.matmul %9, %10, %cst_8 {dimension_numbers = #tpu.dot_dimension_numbers<[1], [0], [0], [1], [0, 0, 1, 1], [], []>} : vector<8x128xbf16>, vector<128x128xbf16>, vector<8x128xf32> -> vector<8x128xf32>
    %c0_9 = arith.constant 0 : index
    %c0_10 = arith.constant 0 : index
    %12 = vector.load %arg5[%c0_9, %c0_10] : memref<1x128xf32, #tpu.memory_space<vmem>>, vector<1x128xf32>
    %13 = vector.broadcast %12 : vector<1x128xf32> to vector<8x128xf32>
    %14 = arith.addf %11, %13 : vector<8x128xf32>
    %cst_11 = arith.constant 0.000000e+00 : f32
    %15 = vector.broadcast %cst_11 : f32 to vector<8x128xf32>
    %16 = arith.maximumf %14, %15 : vector<8x128xf32>
    %17 = arith.truncf %16 : vector<8x128xf32> to vector<8x128xbf16>
    %c0_12 = arith.constant 0 : index
    %c0_13 = arith.constant 0 : index
    %18 = vector.load %arg6[%c0_12, %c0_13] : memref<128x128xbf16, #tpu.memory_space<vmem>>, vector<128x128xbf16>
    %cst_14 = arith.constant dense<0.000000e+00> : vector<8x128xf32>
    %19 = tpu.matmul %17, %18, %cst_14 {dimension_numbers = #tpu.dot_dimension_numbers<[1], [0], [0], [1], [0, 0, 1, 1], [], []>} : vector<8x128xbf16>, vector<128x128xbf16>, vector<8x128xf32> -> vector<8x128xf32>
    %c0_15 = arith.constant 0 : index
    %c0_16 = arith.constant 0 : index
    %20 = vector.load %arg7[%c0_15, %c0_16] : memref<1x128xf32, #tpu.memory_space<vmem>>, vector<1x128xf32>
    %21 = vector.broadcast %20 : vector<1x128xf32> to vector<8x128xf32>
    %22 = arith.addf %19, %21 : vector<8x128xf32>
    %23 = arith.truncf %22 : vector<8x128xf32> to vector<8x128xbf16>
    %c0_17 = arith.constant 0 : index
    %c0_18 = arith.constant 0 : index
    %24 = vector.load %arg8[%c0_17, %c0_18] : memref<8x128xbf16, #tpu.memory_space<vmem>>, vector<8x128xbf16>
    tpu.vector_store %arg8[%c0_17, %c0_18], %23 {strides = array<i32>} : memref<8x128xbf16, #tpu.memory_space<vmem>>, vector<8x128xbf16>,
    return
  }
  func.func @transform_0(%arg0: i32) -> (i32, i32) {
    %c0_i32 = arith.constant 0 : i32
    %c0_i32_0 = arith.constant 0 : i32
    return %arg0, %c0_i32 : i32, i32
  }
  func.func @transform_1(%arg0: i32) -> (i32, i32) {
    %c0_i32 = arith.constant 0 : i32
    %c0_i32_0 = arith.constant 0 : i32
    %c0_i32_1 = arith.constant 0 : i32
    return %c0_i32, %c0_i32_0 : i32, i32
  }
  func.func @transform_2(%arg0: i32) -> (i32, i32) {
    %c0_i32 = arith.constant 0 : i32
    %c0_i32_0 = arith.constant 0 : i32
    %c0_i32_1 = arith.constant 0 : i32
    return %c0_i32, %c0_i32_0 : i32, i32
  }
  func.func @transform_3(%arg0: i32) -> (i32, i32) {
    %c0_i32 = arith.constant 0 : i32
    %c0_i32_0 = arith.constant 0 : i32
    %c0_i32_1 = arith.constant 0 : i32
    return %c0_i32, %c0_i32_0 : i32, i32
  }
  func.func @transform_4(%arg0: i32) -> (i32, i32) {
    %c0_i32 = arith.constant 0 : i32
    %c0_i32_0 = arith.constant 0 : i32
    %c0_i32_1 = arith.constant 0 : i32
    return %c0_i32, %c0_i32_0 : i32, i32
  }
  func.func @transform_5(%arg0: i32) -> (i32, i32) {
    %c0_i32 = arith.constant 0 : i32
    %c0_i32_0 = arith.constant 0 : i32
    %c0_i32_1 = arith.constant 0 : i32
    return %c0_i32, %c0_i32_0 : i32, i32
  }
  func.func @transform_6(%arg0: i32) -> (i32, i32) {
    %c0_i32 = arith.constant 0 : i32
    %c0_i32_0 = arith.constant 0 : i32
    %c0_i32_1 = arith.constant 0 : i32
    return %c0_i32, %c0_i32_0 : i32, i32
  }
  func.func @transform_7(%arg0: i32) -> (i32, i32) {
    %c0_i32 = arith.constant 0 : i32
    %c0_i32_0 = arith.constant 0 : i32
    return %arg0, %c0_i32 : i32, i32
  }
}

</mosaic_0001>

<llo_original>
// kernel: speech_classifier_forward.1
$region0: #{speech_classifier_forward.1}
  #allocation0 [shape = 'u32[]', space=smem, size = 0x4, offset = 0x4, fixed_abs, tag = 'smem constant byte address 0x4 - core index']
  #allocation1 [shape = 'u32[144,128]{1,0:T(1,128)}', space=vmem, size = 0x12000, scoped, tag = 'internal scratch']
  %s0 = inlined_call_operand.hbm [shape: f32[8,64], index: 0, kind: input, shape index: {}]
  %s1 = inlined_call_operand.hbm [shape: bf16[64,128], index: 1, kind: input, shape index: {}]
  %s2 = inlined_call_operand.vmem [shape: f32[1,128], index: 2, kind: input, shape index: {}]
  %s3 = inlined_call_operand.hbm [shape: bf16[128,128], index: 3, kind: input, shape index: {}]
  %s4 = inlined_call_operand.vmem [shape: f32[1,128], index: 4, kind: input, shape index: {}]
  %s5 = inlined_call_operand.hbm [shape: bf16[128,128], index: 5, kind: input, shape index: {}]
  %s6 = inlined_call_operand.vmem [shape: f32[1,128], index: 6, kind: input, shape index: {}]
  %s7 = inlined_call_operand.vmem [shape: bf16[8,128], index: 7, kind: output, shape index: {}]
  %s8 = sld [smem:[#allocation0]]
  $region54: #{speech_classifier_forward.1} parent=0
    _
  %s10 = ssub.s32 1, %s8
  %s11 = scalar_select 0, %s10, %s8
  $region1: #{speech_classifier_forward.1} parent=0
    #allocation2 [shape = 'u8[4096]{0}', space=vmem, size = 0x1000, scoped, tag = 'input window, operand 0, single buffered']
    #allocation3 [shape = 's32[1]{0}', space=sflag, size = 0x4, scoped, tag = 'scoped memory for speech_classifier_forward.1']
    #allocation4 [shape = 'u8[16384]{0}', space=vmem, size = 0x4000, scoped, tag = 'input window, operand 1, single buffered']
    #allocation5 [shape = 's32[1]{0}', space=sflag, size = 0x4, scoped, tag = 'scoped memory for speech_classifier_forward.1']
    #allocation6 [shape = 'u8[32768]{0}', space=vmem, size = 0x8000, scoped, tag = 'input window, operand 3, single buffered']
    #allocation7 [shape = 'u8[32768]{0}', space=vmem, size = 0x8000, scoped, tag = 'input window, operand 5, single buffered']
    #allocation8 [shape = 's32[1]{0}', space=sflag, size = 0x4, scoped, tag = 'scoped memory for speech_classifier_forward.1']
    %12 = vsyncpa [#allocation3], 0
    %13 = vsyncpa [#allocation5], 0
    %14 = vsyncpa [#allocation8], 0
    // Predicated region
    $region2: #{speech_classifier_forward.1} parent=1 // pred_check
      _
    $region3: #{speech_classifier_forward.1} parent=1 // pred_check_branch
      %16 = sbr.rel (0) target = $region5
    $region4: #{speech_classifier_forward.1} parent=1 // pred_region
      %s18 = ssub.s32 128, 128
      %19 = vsyncadd [#allocation3], %s18
      %s21 = sshll.u32 [#allocation2], 4
      %s22 = int_to_ptr.vmem [resolvable:$true] %s21
      %24 = dma.hbm_to_vmem [thread:$0]  %s0, 128, %s22, [#allocation3]
    $region5: #{speech_classifier_forward.1} parent=1 // pred_fallthru
      _
    // Predicated region
    $region6: #{speech_classifier_forward.1} parent=1 // pred_check
      _
    $region7: #{speech_classifier_forward.1} parent=1 // pred_check_branch
      %26 = sbr.rel (0) target = $region9
    $region8: #{speech_classifier_forward.1} parent=1 // pred_region
      %s28 = ssub.s32 512, 512
      %29 = vsyncadd [#allocation5], %s28
      %s30 = sshll.u32 [#allocation4], 4
      %s31 = int_to_ptr.vmem [resolvable:$true] %s30
      %36 = dma.hbm_to_vmem [thread:$0]  %s1, 512, %s31, [#allocation5], 64, 64, 4
    $region9: #{speech_classifier_forward.1} parent=1 // pred_fallthru
      _
    // Predicated region
    $region10: #{speech_classifier_forward.1} parent=1 // pred_check
      _
    $region11: #{speech_classifier_forward.1} parent=1 // pred_check_branch
      %38 = sbr.rel (0) target = $region13
    $region12: #{speech_classifier_forward.1} parent=1 // pred_region
      _
    $region13: #{speech_classifier_forward.1} parent=1 // pred_fallthru
      _
    // Predicated region
    $region14: #{speech_classifier_forward.1} parent=1 // pred_check
      _
    $region15: #{speech_classifier_forward.1} parent=1 // pred_check_branch
      %40 = sbr.rel (0) target = $region17
    $region16: #{speech_classifier_forward.1} parent=1 // pred_region
      %s42 = ssub.s32 1024, 1024
      %43 = vsyncadd [#allocation5], %s42
      %s44 = sshll.u32 [#allocation6], 4
      %s45 = int_to_ptr.vmem [resolvable:$true] %s44
      %50 = dma.hbm_to_vmem [thread:$0]  %s3, 1024, %s45, [#allocation5], 64, 64, 4
    $region17: #{speech_classifier_forward.1} parent=1 // pred_fallthru
      _
    // Predicated region
    $region18: #{speech_classifier_forward.1} parent=1 // pred_check
      _
    $region19: #{speech_classifier_forward.1} parent=1 // pred_check_branch
      %52 = sbr.rel (0) target = $region21
    $region20: #{speech_classifier_forward.1} parent=1 // pred_region
      _
    $region21: #{speech_classifier_forward.1} parent=1 // pred_fallthru
      _
    // Predicated region
    $region22: #{speech_classifier_forward.1} parent=1 // pred_check
      _
    $region23: #{speech_classifier_forward.1} parent=1 // pred_check_branch
      %54 = sbr.rel (0) target = $region25
    $region24: #{speech_classifier_forward.1} parent=1 // pred_region
      %s56 = ssub.s32 1024, 1024
      %57 = vsyncadd [#allocation8], %s56
      %s58 = sshll.u32 [#allocation7], 4
      %s59 = int_to_ptr.vmem [resolvable:$true] %s58
      %64 = dma.hbm_to_vmem [thread:$0]  %s5, 1024, %s59, [#allocation8], 64, 64, 4
    $region25: #{speech_classifier_forward.1} parent=1 // pred_fallthru
      _
    // Predicated region
    $region26: #{speech_classifier_forward.1} parent=1 // pred_check
      _
    $region27: #{speech_classifier_forward.1} parent=1 // pred_check_branch
      %66 = sbr.rel (0) target = $region29
    $region28: #{speech_classifier_forward.1} parent=1 // pred_region
      _
    $region29: #{speech_classifier_forward.1} parent=1 // pred_fallthru
      _
    // Predicated region
    $region30: #{speech_classifier_forward.1} parent=1 // pred_check
      _
    $region31: #{speech_classifier_forward.1} parent=1 // pred_check_branch
      %68 = sbr.rel (0) target = $region33
    $region32: #{speech_classifier_forward.1} parent=1 // pred_region
      %69 = dma.done [#allocation3], 128
    $region33: #{speech_classifier_forward.1} parent=1 // pred_fallthru
      _
    // Predicated region
    $region34: #{speech_classifier_forward.1} parent=1 // pred_check
      _
    $region35: #{speech_classifier_forward.1} parent=1 // pred_check_branch
      %71 = sbr.rel (0) target = $region37
    $region36: #{speech_classifier_forward.1} parent=1 // pred_region
      %72 = dma.done [#allocation5], 512
    $region37: #{speech_classifier_forward.1} parent=1 // pred_fallthru
      _
    // Predicated region
    $region38: #{speech_classifier_forward.1} parent=1 // pred_check
      _
    $region39: #{speech_classifier_forward.1} parent=1 // pred_check_branch
      %74 = sbr.rel (0) target = $region41
    $region40: #{speech_classifier_forward.1} parent=1 // pred_region
      %75 = dma.done [#allocation5], 1024
    $region41: #{speech_classifier_forward.1} parent=1 // pred_fallthru
      _
    // Predicated region
    $region42: #{speech_classifier_forward.1} parent=1 // pred_check
      _
    $region43: #{speech_classifier_forward.1} parent=1 // pred_check_branch
      %77 = sbr.rel (0) target = $region45
    $region44: #{speech_classifier_forward.1} parent=1 // pred_region
      %78 = dma.done [#allocation8], 1024
    $region45: #{speech_classifier_forward.1} parent=1 // pred_fallthru
      _
    %v80 = vld [vmem:[#allocation2] sm:$0xff]
    %v81 = vpack.c.bf16 %v80, %v80
    %v82 = vld [vmem:[#allocation4] sm:$0xf]
    %v83 = vld [vmem:[#allocation4 + $0x4] sm:$0xf]
    %v84 = vld [vmem:[#allocation4 + $0x8] sm:$0xf]
    %v85 = vld [vmem:[#allocation4 + $0xc] sm:$0xf]
    %v86 = vld [vmem:[#allocation4 + $0x10] sm:$0xf]
    %v87 = vld [vmem:[#allocation4 + $0x14] sm:$0xf]
    %v88 = vld [vmem:[#allocation4 + $0x18] sm:$0xf]
    %v89 = vld [vmem:[#allocation4 + $0x1c] sm:$0xf]
    %v90 = vld [vmem:[%s2] sm:$0x1]
    %v92 = vlaneseq
    %v93 = vshrl.u32 %v92, 7
    %v94 = vsub.s32 0, %v93
    %v95 = vrot.slane %v90, %v94
    %v105 = vunpack.c.l.b16 %v82
    %v106 = vunpack.c.l.b16 %v83
    %v107 = vunpack.c.l.b16 %v84
    %v108 = vunpack.c.l.b16 %v85
    %v109 = vunpack.c.l.b16 %v86
    %v110 = vunpack.c.l.b16 %v87
    %v111 = vunpack.c.l.b16 %v88
    %v112 = vunpack.c.l.b16 %v89
    %v113 = vpack.c.b16 %v106, %v105
    %v114 = vpack.c.b16 %v108, %v107
    %v115 = vpack.c.b16 %v110, %v109
    %v116 = vpack.c.b16 %v112, %v111
    %vm121 = vcmask 523264
    %v123 = vsel %vm121, %v81, 0
    %125 = vmatprep.subr.bf16.mxu0 0
    %126 = vmatpush1.bf16.msra.mxu0 0
    %127 = vmatprep.subr.bf16.mxu0 0
    %128 = vmatpush1.bf16.msra.mxu0 0
    %129 = vmatprep.subr.bf16.mxu0 0
    %130 = vmatpush1.bf16.msra.mxu0 0
    %131 = vmatprep.subr.bf16.mxu0 0
    %132 = vmatpush1.bf16.msra.mxu0 0
    %133 = vmatprep.subr.bf16.mxu0 0
    %134 = vmatpush1.bf16.msra.mxu0 %v116
    %135 = vmatprep.subr.bf16.mxu0 0
    %136 = vmatpush1.bf16.msra.mxu0 %v115
    %137 = vmatprep.subr.bf16.mxu0 0
    %138 = vmatpush1.bf16.msra.mxu0 %v114
    %139 = vmatprep.subr.bf16.mxu0 0
    %140 = vmatpush1.bf16.msra.mxu0 %v113
    %141 = vmatprep.subr.bf16.mxu0 0
    %142 = vmatpush2.bf16.msra.mxu0 0
    %143 = vmatprep.subr.bf16.mxu0 0
    %144 = vmatpush2.bf16.msra.mxu0 0
    %145 = vmatprep.subr.bf16.mxu0 0
    %146 = vmatpush2.bf16.msra.mxu0 0
    %147 = vmatprep.subr.bf16.mxu0 0
    %148 = vmatpush2.bf16.msra.mxu0 0
    %149 = vmatprep.subr.bf16.mxu0 0
    %150 = vmatpush2.bf16.msra.mxu0 0
    %151 = vmatprep.subr.bf16.mxu0 0
    %152 = vmatpush2.bf16.msra.mxu0 0
    %153 = vmatprep.subr.bf16.mxu0 0
    %154 = vmatpush2.bf16.msra.mxu0 0
    %155 = vmatprep.subr.bf16.mxu0 0
    %156 = vmatpush2.bf16.msra.mxu0 0
    %157 = vmatprep.mubr.bf16.mxu0 0
    %158 = vmatmul.mubr.bf16.gmra.mxu0 %v123
    %v159 = vpop.f32.mrf.mxu0
    %v160 = vadd.f32 %v95, %v159
    %v161 = vpop.f32.mrf.mxu0
    %v162 = vpop.f32.mrf.mxu0
    %v163 = vpop.f32.mrf.mxu0
    %164 = vdwg.mxu0
    %v165 = vmax.f32 %v160, 0.0
    %v166 = vpack.c.bf16 %v165, %v165
    %v167 = vld [vmem:[#allocation6] sm:$0xf]
    %v168 = vld [vmem:[#allocation6 + $0x4] sm:$0xf]
    %v169 = vld [vmem:[#allocation6 + $0x8] sm:$0xf]
    %v170 = vld [vmem:[#allocation6 + $0xc] sm:$0xf]
    %v171 = vld [vmem:[#allocation6 + $0x10] sm:$0xf]
    %v172 = vld [vmem:[#allocation6 + $0x14] sm:$0xf]
    %v173 = vld [vmem:[#allocation6 + $0x18] sm:$0xf]
    %v174 = vld [vmem:[#allocation6 + $0x1c] sm:$0xf]
    %v175 = vld [vmem:[#allocation6 + $0x20] sm:$0xf]
    %v176 = vld [vmem:[#allocation6 + $0x24] sm:$0xf]
    %v177 = vld [vmem:[#allocation6 + $0x28] sm:$0xf]
    %v178 = vld [vmem:[#allocation6 + $0x2c] sm:$0xf]
    %v179 = vld [vmem:[#allocation6 + $0x30] sm:$0xf]
    %v180 = vld [vmem:[#allocation6 + $0x34] sm:$0xf]
    %v181 = vld [vmem:[#allocation6 + $0x38] sm:$0xf]
    %v182 = vld [vmem:[#allocation6 + $0x3c] sm:$0xf]
    %v183 = vld [vmem:[%s4] sm:$0x1]
    %v185 = vlaneseq
    %v186 = vshrl.u32 %v185, 7
    %v187 = vsub.s32 0, %v186
    %v188 = vrot.slane %v183, %v187
    %v206 = vunpack.c.l.b16 %v167
    %v207 = vunpack.c.l.b16 %v168
    %v208 = vunpack.c.l.b16 %v169
    %v209 = vunpack.c.l.b16 %v170
    %v210 = vunpack.c.l.b16 %v171
    %v211 = vunpack.c.l.b16 %v172
    %v212 = vunpack.c.l.b16 %v173
    %v213 = vunpack.c.l.b16 %v174
    %v214 = vunpack.c.l.b16 %v175
    %v215 = vunpack.c.l.b16 %v176
    %v216 = vunpack.c.l.b16 %v177
    %v217 = vunpack.c.l.b16 %v178
    %v218 = vunpack.c.l.b16 %v179
    %v219 = vunpack.c.l.b16 %v180
    %v220 = vunpack.c.l.b16 %v181
    %v221 = vunpack.c.l.b16 %v182
    %v222 = vpack.c.b16 %v207, %v206
    %v223 = vpack.c.b16 %v209, %v208
    %v224 = vpack.c.b16 %v211, %v210
    %v225 = vpack.c.b16 %v213, %v212
    %v226 = vpack.c.b16 %v215, %v214
    %v227 = vpack.c.b16 %v217, %v216
    %v228 = vpack.c.b16 %v219, %v218
    %v229 = vpack.c.b16 %v221, %v220
    %238 = vmatprep.subr.bf16.mxu0 0
    %239 = vmatpush1.bf16.msra.mxu0 %v229
    %240 = vmatprep.subr.bf16.mxu0 0
    %241 = vmatpush1.bf16.msra.mxu0 %v228
    %242 = vmatprep.subr.bf16.mxu0 0
    %243 = vmatpush1.bf16.msra.mxu0 %v227
    %244 = vmatprep.subr.bf16.mxu0 0
    %245 = vmatpush1.bf16.msra.mxu0 %v226
    %246 = vmatprep.subr.bf16.mxu0 0
    %247 = vmatpush1.bf16.msra.mxu0 %v225
    %248 = vmatprep.subr.bf16.mxu0 0
    %249 = vmatpush1.bf16.msra.mxu0 %v224
    %250 = vmatprep.subr.bf16.mxu0 0
    %251 = vmatpush1.bf16.msra.mxu0 %v223
    %252 = vmatprep.subr.bf16.mxu0 0
    %253 = vmatpush1.bf16.msra.mxu0 %v222
    %254 = vmatprep.subr.bf16.mxu0 0
    %255 = vmatpush2.bf16.msra.mxu0 0
    %256 = vmatprep.subr.bf16.mxu0 0
    %257 = vmatpush2.bf16.msra.mxu0 0
    %258 = vmatprep.subr.bf16.mxu0 0
    %259 = vmatpush2.bf16.msra.mxu0 0
    %260 = vmatprep.subr.bf16.mxu0 0
    %261 = vmatpush2.bf16.msra.mxu0 0
    %262 = vmatprep.subr.bf16.mxu0 0
    %263 = vmatpush2.bf16.msra.mxu0 0
    %264 = vmatprep.subr.bf16.mxu0 0
    %265 = vmatpush2.bf16.msra.mxu0 0
    %266 = vmatprep.subr.bf16.mxu0 0
    %267 = vmatpush2.bf16.msra.mxu0 0
    %268 = vmatprep.subr.bf16.mxu0 0
    %269 = vmatpush2.bf16.msra.mxu0 0
    %270 = vmatprep.mubr.bf16.mxu0 0
    %271 = vmatmul.mubr.bf16.gmra.mxu0 %v166
    %v272 = vpop.f32.mrf.mxu0
    %v273 = vadd.f32 %v188, %v272
    %v274 = vpop.f32.mrf.mxu0
    %v275 = vpop.f32.mrf.mxu0
    %v276 = vpop.f32.mrf.mxu0
    %277 = vdwg.mxu0
    %v278 = vmax.f32 %v273, 0.0
    %v279 = vpack.c.bf16 %v278, %v278
    %v280 = vld [vmem:[#allocation7] sm:$0xf]
    %v281 = vld [vmem:[#allocation7 + $0x4] sm:$0xf]
    %v282 = vld [vmem:[#allocation7 + $0x8] sm:$0xf]
    %v283 = vld [vmem:[#allocation7 + $0xc] sm:$0xf]
    %v284 = vld [vmem:[#allocation7 + $0x10] sm:$0xf]
    %v285 = vld [vmem:[#allocation7 + $0x14] sm:$0xf]
    %v286 = vld [vmem:[#allocation7 + $0x18] sm:$0xf]
    %v287 = vld [vmem:[#allocation7 + $0x1c] sm:$0xf]
    %v288 = vld [vmem:[#allocation7 + $0x20] sm:$0xf]
    %v289 = vld [vmem:[#allocation7 + $0x24] sm:$0xf]
    %v290 = vld [vmem:[#allocation7 + $0x28] sm:$0xf]
    %v291 = vld [vmem:[#allocation7 + $0x2c] sm:$0xf]
    %v292 = vld [vmem:[#allocation7 + $0x30] sm:$0xf]
    %v293 = vld [vmem:[#allocation7 + $0x34] sm:$0xf]
    %v294 = vld [vmem:[#allocation7 + $0x38] sm:$0xf]
    %v295 = vld [vmem:[#allocation7 + $0x3c] sm:$0xf]
    %v296 = vld [vmem:[%s6] sm:$0x1]
    %v298 = vlaneseq
    %v299 = vshrl.u32 %v298, 7
    %v300 = vsub.s32 0, %v299
    %v301 = vrot.slane %v296, %v300
    %v319 = vunpack.c.l.b16 %v280
    %v320 = vunpack.c.l.b16 %v281
    %v321 = vunpack.c.l.b16 %v282
    %v322 = vunpack.c.l.b16 %v283
    %v323 = vunpack.c.l.b16 %v284
    %v324 = vunpack.c.l.b16 %v285
    %v325 = vunpack.c.l.b16 %v286
    %v326 = vunpack.c.l.b16 %v287
    %v327 = vunpack.c.l.b16 %v288
    %v328 = vunpack.c.l.b16 %v289
    %v329 = vunpack.c.l.b16 %v290
    %v330 = vunpack.c.l.b16 %v291
    %v331 = vunpack.c.l.b16 %v292
    %v332 = vunpack.c.l.b16 %v293
    %v333 = vunpack.c.l.b16 %v294
    %v334 = vunpack.c.l.b16 %v295
    %v335 = vpack.c.b16 %v320, %v319
    %v336 = vpack.c.b16 %v322, %v321
    %v337 = vpack.c.b16 %v324, %v323
    %v338 = vpack.c.b16 %v326, %v325
    %v339 = vpack.c.b16 %v328, %v327
    %v340 = vpack.c.b16 %v330, %v329
    %v341 = vpack.c.b16 %v332, %v331
    %v342 = vpack.c.b16 %v334, %v333
    %351 = vmatprep.subr.bf16.mxu0 0
    %352 = vmatpush1.bf16.msra.mxu0 %v342
    %353 = vmatprep.subr.bf16.mxu0 0
    %354 = vmatpush1.bf16.msra.mxu0 %v341
    %355 = vmatprep.subr.bf16.mxu0 0
    %356 = vmatpush1.bf16.msra.mxu0 %v340
    %357 = vmatprep.subr.bf16.mxu0 0
    %358 = vmatpush1.bf16.msra.mxu0 %v339
    %359 = vmatprep.subr.bf16.mxu0 0
    %360 = vmatpush1.bf16.msra.mxu0 %v338
    %361 = vmatprep.subr.bf16.mxu0 0
    %362 = vmatpush1.bf16.msra.mxu0 %v337
    %363 = vmatprep.subr.bf16.mxu0 0
    %364 = vmatpush1.bf16.msra.mxu0 %v336
    %365 = vmatprep.subr.bf16.mxu0 0
    %366 = vmatpush1.bf16.msra.mxu0 %v335
    %367 = vmatprep.subr.bf16.mxu0 0
    %368 = vmatpush2.bf16.msra.mxu0 0
    %369 = vmatprep.subr.bf16.mxu0 0
    %370 = vmatpush2.bf16.msra.mxu0 0
    %371 = vmatprep.subr.bf16.mxu0 0
    %372 = vmatpush2.bf16.msra.mxu0 0
    %373 = vmatprep.subr.bf16.mxu0 0
    %374 = vmatpush2.bf16.msra.mxu0 0
    %375 = vmatprep.subr.bf16.mxu0 0
    %376 = vmatpush2.bf16.msra.mxu0 0
    %377 = vmatprep.subr.bf16.mxu0 0
    %378 = vmatpush2.bf16.msra.mxu0 0
    %379 = vmatprep.subr.bf16.mxu0 0
    %380 = vmatpush2.bf16.msra.mxu0 0
    %381 = vmatprep.subr.bf16.mxu0 0
    %382 = vmatpush2.bf16.msra.mxu0 0
    %383 = vmatprep.mubr.bf16.mxu0 0
    %384 = vmatmul.mubr.bf16.gmra.mxu0 %v279
    %v385 = vpop.f32.mrf.mxu0
    %v386 = vadd.f32 %v301, %v385
    %v387 = vpop.f32.mrf.mxu0
    %v388 = vpop.f32.mrf.mxu0
    %v389 = vpop.f32.mrf.mxu0
    %390 = vdwg.mxu0
    %v391 = vpack.c.bf16 %v386, %v386
    %392 = vst [vmem:[%s7] sm:$0xf] %v391
    // Predicated region
    $region46: #{speech_classifier_forward.1} parent=1 // pred_check
      _
    $region47: #{speech_classifier_forward.1} parent=1 // pred_check_branch
      %394 = sbr.rel (0) target = $region49
    $region48: #{speech_classifier_forward.1} parent=1 // pred_region
      _
    $region49: #{speech_classifier_forward.1} parent=1 // pred_fallthru
      _
    // Predicated region
    $region50: #{speech_classifier_forward.1} parent=1 // pred_check
      _
    $region51: #{speech_classifier_forward.1} parent=1 // pred_check_branch
      %396 = sbr.rel (0) target = $region53
    $region52: #{speech_classifier_forward.1} parent=1 // pred_region
      _
    $region53: #{speech_classifier_forward.1} parent=1 // pred_fallthru
      _
    %397 = vsyncpa [#allocation3], 1
    %398 = vsyncpa [#allocation5], 1
    %399 = vsyncpa [#allocation8], 1

</llo_original>
